<compile_context>
chip_gen: v7x
topology: tpu7x:2x2x1
jax: 0.10.0
libtpu: 0.0.40
codegen_flags: <defaults>
</compile_context>

<pallas_src>
import jax
import jax.numpy as jnp
from jax.experimental import pallas as pl
from jax.experimental.pallas import tpu as pltpu


def _round_up(a: int, b: int) -> int:
    return ((a + b - 1) // b) * b


def ffn_kernel(x_ref, w1_ref, b1_ref, w2_ref, b2_ref, o_ref, acc_ref):
    # x_ref : (tm, dm)        row tile of the input
    # w1_ref: (dm, tk)        k-th column chunk of W1
    # b1_ref: (1, tk)         k-th chunk of b1
    # w2_ref: (tk, dm)        k-th row chunk of W2
    # b2_ref: (1, dm)         full b2 (applied exactly once)
    # o_ref : (tm, dm)        output row tile
    # acc_ref: (tm, dm) f32   VMEM accumulator, resident across the k axis
    k = pl.program_id(1)

    @pl.when(k == 0)
    def _():
        # Initialize the accumulator with the second bias -> b2 added exactly once.
        acc_ref[...] = jnp.broadcast_to(
            b2_ref[...].astype(jnp.float32), acc_ref.shape)

    # First linear (chunk of dim_ffn) + bias + ReLU, f32 accumulation on the MXU.
    h = jnp.dot(x_ref[...], w1_ref[...],
                preferred_element_type=jnp.float32) + b1_ref[...]
    h = jnp.maximum(h, 0.0)  # ReLU on the VPU

    # Second linear: accumulate this dim_ffn chunk's contribution.
    acc_ref[...] += jnp.dot(h.astype(w2_ref.dtype), w2_ref[...],
                            preferred_element_type=jnp.float32)

    @pl.when(k == pl.num_programs(1) - 1)
    def _():
        o_ref[...] = acc_ref[...].astype(o_ref.dtype)


def position_wise_ffn(x, w1, b1, w2, b2, *, tm=256, tk=512, mxu_dtype=None):
    """x: (batch, seq, dim_model) -> (batch, seq, dim_model).

    w1: (dim_model, dim_ffn), b1: (dim_ffn,)
    w2: (dim_ffn, dim_model), b2: (dim_model,)

    tm : row tile (batch*seq axis). 256 suits v6e/v7x; use 128 on v5e.
    tk : dim_ffn chunk streamed through VMEM per grid step.
    mxu_dtype : optional dtype (e.g. jnp.bfloat16) to cast x/W1/W2 for the MXU;
                accumulation stays f32. Default: keep input dtype.
    """
    out_dtype = x.dtype
    batch, seq, dim_model = x.shape
    dim_ffn = w1.shape[1]
    M = batch * seq

    # ---- padded / tiled geometry (lane-dense: multiples of 128 on features) ----
    dm_pad = _round_up(dim_model, 128)
    ffn_128 = _round_up(dim_ffn, 128)
    tk_eff = min(_round_up(tk, 128), ffn_128)
    ffn_pad = _round_up(ffn_128, tk_eff)

    m_8 = _round_up(M, 8)
    tm_eff = min(_round_up(tm, 8), m_8)
    m_pad = _round_up(m_8, tm_eff)

    # ---- pad operands with zeros (zero rows/cols contribute nothing) ----
    x2d = jnp.pad(x.reshape(M, dim_model),
                  ((0, m_pad - M), (0, dm_pad - dim_model)))
    w1p = jnp.pad(w1, ((0, dm_pad - dim_model), (0, ffn_pad - dim_ffn)))
    b1p = jnp.pad(b1, (0, ffn_pad - dim_ffn)).reshape(1, ffn_pad)
    w2p = jnp.pad(w2, ((0, ffn_pad - dim_ffn), (0, dm_pad - dim_model)))
    b2p = jnp.pad(b2, (0, dm_pad - dim_model)).reshape(1, dm_pad)

    if mxu_dtype is not None:
        # bf16 (v6e/v7x) operands, f32 accumulation; biases stay f32.
        x2d = x2d.astype(mxu_dtype)
        w1p = w1p.astype(mxu_dtype)
        w2p = w2p.astype(mxu_dtype)
    b1p = b1p.astype(jnp.float32)
    b2p = b2p.astype(jnp.float32)

    grid = (m_pad // tm_eff, ffn_pad // tk_eff)

    out2d = pl.pallas_call(
        ffn_kernel,
        out_shape=jax.ShapeDtypeStruct((m_pad, dm_pad), out_dtype),
        grid_spec=pltpu.PrefetchScalarGridSpec(
            num_scalar_prefetch=0,
            grid=grid,
            in_specs=[
                pl.BlockSpec((tm_eff, dm_pad), lambda i, k: (i, 0)),   # x row tile
                pl.BlockSpec((dm_pad, tk_eff), lambda i, k: (0, k)),   # W1 column chunk
                pl.BlockSpec((1, tk_eff),      lambda i, k: (0, k)),   # b1 chunk
                pl.BlockSpec((tk_eff, dm_pad), lambda i, k: (k, 0)),   # W2 row chunk
                pl.BlockSpec((1, dm_pad),      lambda i, k: (0, 0)),   # b2 (full)
            ],
            out_specs=pl.BlockSpec((tm_eff, dm_pad), lambda i, k: (i, 0)),
            scratch_shapes=[pltpu.VMEM((tm_eff, dm_pad), jnp.float32)],
        ),
        compiler_params=pltpu.CompilerParams(
            dimension_semantics=("parallel", "arbitrary"),
            vmem_limit_bytes=64 * 1024 * 1024,
        ),
    )(x2d, w1p, b1p, w2p, b2p)

    # TODO(synk): optionally hold b2 / grid-invariant blocks single-buffered via
    # pipeline_mode=pl.Buffered(1) to reclaim a little VMEM on v7x.
    return out2d[:M, :dim_model].reshape(batch, seq, dim_model)


if __name__ == "__main__":
    # Small shapes consistent with the module: (batch=2, seq=8, dim_model=32), dim_ffn=64
    batch, seq, dim_model, dim_ffn = 2, 8, 32, 64

    key = jax.random.PRNGKey(0)
    kx, kw1, kb1, kw2, kb2 = jax.random.split(key, 5)

    x = jax.random.normal(kx, (batch, seq, dim_model), dtype=jnp.float32)
    # torch.nn.Linear weights, stored transposed: (in, out)
    w1 = jax.random.normal(kw1, (dim_model, dim_ffn), dtype=jnp.float32) * 0.1
    b1 = jax.random.normal(kb1, (dim_ffn,), dtype=jnp.float32) * 0.1
    w2 = jax.random.normal(kw2, (dim_ffn, dim_model), dtype=jnp.float32) * 0.1
    b2 = jax.random.normal(kb2, (dim_model,), dtype=jnp.float32) * 0.1

    out = position_wise_ffn(x, w1, b1, w2, b2)
    out = jax.block_until_ready(out)

    # Reference check in plain JAX (f32 everywhere -> tight tolerance)
    ref = jnp.maximum(x @ w1 + b1, 0.0) @ w2 + b2
    assert out.shape == (batch, seq, dim_model)
    assert jnp.allclose(out, ref, atol=1e-5, rtol=1e-5), float(
        jnp.max(jnp.abs(out - ref)))

    print("KERNEL_OK")
</pallas_src>

<mosaic_0001>
module attributes {stable_mosaic.version = 11 : i64} {
  func.func @ffn_kernel(%arg0: i32, %arg1: i32, %arg2: memref<16x128xf32, #tpu.memory_space<vmem>>, %arg3: memref<128x128xf32, #tpu.memory_space<vmem>>, %arg4: memref<1x128xf32, #tpu.memory_space<vmem>>, %arg5: memref<128x128xf32, #tpu.memory_space<vmem>>, %arg6: memref<1x128xf32, #tpu.memory_space<vmem>>, %arg7: memref<16x128xf32, #tpu.memory_space<vmem>>, %arg8: memref<16x128xf32, #tpu.memory_space<vmem>>) attributes {dimension_semantics = [#tpu.dimension_semantics<parallel>, #tpu.dimension_semantics<arbitrary>], iteration_bounds = array<i64: 1, 1>, scalar_prefetch = 0 : i64, scratch_operands = 1 : i64, tpu.core_type = #tpu.core_type<tc>, window_params = [{transform_indices = @transform_0, window_bounds = array<i64: 16, 128>}, {transform_indices = @transform_1, window_bounds = array<i64: 128, 128>}, {transform_indices = @transform_2, window_bounds = array<i64: 1, 128>}, {transform_indices = @transform_3, window_bounds = array<i64: 128, 128>}, {pipeline_mode = #tpu.pipeline_mode<synchronous>, transform_indices = @transform_4, window_bounds = array<i64: 1, 128>}, {transform_indices = @transform_5, window_bounds = array<i64: 16, 128>}]} {
    %c0_i32 = arith.constant 0 : i32
    %0 = arith.cmpi eq, %arg1, %c0_i32 : i32
    %1 = arith.extui %0 : i1 to i32
    %c0_i32_0 = arith.constant 0 : i32
    %2 = arith.cmpi ne, %1, %c0_i32_0 : i32
    scf.if %2 {
      %c0_16 = arith.constant 0 : index
      %c0_17 = arith.constant 0 : index
      %19 = vector.load %arg6[%c0_16, %c0_17] : memref<1x128xf32, #tpu.memory_space<vmem>>, vector<1x128xf32>
      %20 = vector.shape_cast %19 : vector<1x128xf32> to vector<1x128xf32>
      %21 = vector.broadcast %20 : vector<1x128xf32> to vector<16x128xf32>
      %c0_18 = arith.constant 0 : index
      %c0_19 = arith.constant 0 : index
      %22 = vector.load %arg8[%c0_18, %c0_19] : memref<16x128xf32, #tpu.memory_space<vmem>>, vector<16x128xf32>
      tpu.vector_store %arg8[%c0_18, %c0_19], %21 {strides = array<i32>} : memref<16x128xf32, #tpu.memory_space<vmem>>, vector<16x128xf32>,
    } else {
    }
    %c0 = arith.constant 0 : index
    %c0_1 = arith.constant 0 : index
    %3 = vector.load %arg2[%c0, %c0_1] : memref<16x128xf32, #tpu.memory_space<vmem>>, vector<16x128xf32>
    %c0_2 = arith.constant 0 : index
    %c0_3 = arith.constant 0 : index
    %4 = vector.load %arg3[%c0_2, %c0_3] : memref<128x128xf32, #tpu.memory_space<vmem>>, vector<128x128xf32>
    %cst = arith.constant dense<0.000000e+00> : vector<16x128xf32>
    %5 = tpu.matmul %3, %4, %cst {dimension_numbers = #tpu.dot_dimension_numbers<[1], [0], [0], [1], [0, 0, 1, 1], [], []>} : vector<16x128xf32>, vector<128x128xf32>, vector<16x128xf32> -> vector<16x128xf32>
    %c0_4 = arith.constant 0 : index
    %c0_5 = arith.constant 0 : index
    %6 = vector.load %arg4[%c0_4, %c0_5] : memref<1x128xf32, #tpu.memory_space<vmem>>, vector<1x128xf32>
    %7 = vector.broadcast %6 : vector<1x128xf32> to vector<16x128xf32>
    %8 = arith.addf %5, %7 : vector<16x128xf32>
    %cst_6 = arith.constant 0.000000e+00 : f32
    %9 = vector.broadcast %cst_6 : f32 to vector<16x128xf32>
    %10 = arith.maximumf %8, %9 : vector<16x128xf32>
    %c0_7 = arith.constant 0 : index
    %c0_8 = arith.constant 0 : index
    %11 = vector.load %arg8[%c0_7, %c0_8] : memref<16x128xf32, #tpu.memory_space<vmem>>, vector<16x128xf32>
    %c0_9 = arith.constant 0 : index
    %c0_10 = arith.constant 0 : index
    %12 = vector.load %arg5[%c0_9, %c0_10] : memref<128x128xf32, #tpu.memory_space<vmem>>, vector<128x128xf32>
    %cst_11 = arith.constant dense<0.000000e+00> : vector<16x128xf32>
    %13 = tpu.matmul %10, %12, %cst_11 {dimension_numbers = #tpu.dot_dimension_numbers<[1], [0], [0], [1], [0, 0, 1, 1], [], []>} : vector<16x128xf32>, vector<128x128xf32>, vector<16x128xf32> -> vector<16x128xf32>
    %14 = arith.addf %11, %13 : vector<16x128xf32>
    %c0_12 = arith.constant 0 : index
    %c0_13 = arith.constant 0 : index
    %15 = vector.load %arg8[%c0_12, %c0_13] : memref<16x128xf32, #tpu.memory_space<vmem>>, vector<16x128xf32>
    tpu.vector_store %arg8[%c0_12, %c0_13], %14 {strides = array<i32>} : memref<16x128xf32, #tpu.memory_space<vmem>>, vector<16x128xf32>,
    %c0_i32_14 = arith.constant 0 : i32
    %16 = arith.cmpi eq, %arg1, %c0_i32_14 : i32
    %17 = arith.extui %16 : i1 to i32
    %c0_i32_15 = arith.constant 0 : i32
    %18 = arith.cmpi ne, %17, %c0_i32_15 : i32
    scf.if %18 {
      %c0_16 = arith.constant 0 : index
      %c0_17 = arith.constant 0 : index
      %19 = vector.load %arg8[%c0_16, %c0_17] : memref<16x128xf32, #tpu.memory_space<vmem>>, vector<16x128xf32>
      %c0_18 = arith.constant 0 : index
      %c0_19 = arith.constant 0 : index
      %20 = vector.load %arg7[%c0_18, %c0_19] : memref<16x128xf32, #tpu.memory_space<vmem>>, vector<16x128xf32>
      tpu.vector_store %arg7[%c0_18, %c0_19], %19 {strides = array<i32>} : memref<16x128xf32, #tpu.memory_space<vmem>>, vector<16x128xf32>,
    } else {
    }
    return
  }
  func.func @transform_0(%arg0: i32, %arg1: i32) -> (i32, i32) {
    %c0_i32 = arith.constant 0 : i32
    %c0_i32_0 = arith.constant 0 : i32
    return %arg0, %c0_i32 : i32, i32
  }
  func.func @transform_1(%arg0: i32, %arg1: i32) -> (i32, i32) {
    %c0_i32 = arith.constant 0 : i32
    %c0_i32_0 = arith.constant 0 : i32
    return %c0_i32, %arg1 : i32, i32
  }
  func.func @transform_2(%arg0: i32, %arg1: i32) -> (i32, i32) {
    %c0_i32 = arith.constant 0 : i32
    %c0_i32_0 = arith.constant 0 : i32
    return %c0_i32, %arg1 : i32, i32
  }
  func.func @transform_3(%arg0: i32, %arg1: i32) -> (i32, i32) {
    %c0_i32 = arith.constant 0 : i32
    %c0_i32_0 = arith.constant 0 : i32
    return %arg1, %c0_i32 : i32, i32
  }
  func.func @transform_4(%arg0: i32, %arg1: i32) -> (i32, i32) {
    %c0_i32 = arith.constant 0 : i32
    %c0_i32_0 = arith.constant 0 : i32
    %c0_i32_1 = arith.constant 0 : i32
    return %c0_i32, %c0_i32_0 : i32, i32
  }
  func.func @transform_5(%arg0: i32, %arg1: i32) -> (i32, i32) {
    %c0_i32 = arith.constant 0 : i32
    %c0_i32_0 = arith.constant 0 : i32
    return %arg0, %c0_i32 : i32, i32
  }
}

</mosaic_0001>

<llo_original>
// kernel: tpu_custom_call.1
$region0: #{tpu_custom_call.1}
  #allocation0 [shape = 'u32[]', space=smem, size = 0x4, offset = 0x4, fixed_abs, tag = 'smem constant byte address 0x4 - core index']
  #allocation1 [shape = 'u32[144,128]{1,0:T(1,128)}', space=vmem, size = 0x12000, scoped, tag = 'internal scratch']
  #allocation2 [shape = 'f32[16,128]{1,0:T(8,128)}', space=vmem, size = 0x2000, scoped, tag = 'scratch operand']
  %s0 = inlined_call_operand.hbm [shape: f32[16,128], index: 0, kind: input, shape index: {}]
  %s1 = inlined_call_operand.hbm [shape: f32[128,128], index: 1, kind: input, shape index: {}]
  %s2 = inlined_call_operand.hbm [shape: f32[1,128], index: 2, kind: input, shape index: {}]
  %s3 = inlined_call_operand.hbm [shape: f32[128,128], index: 3, kind: input, shape index: {}]
  %s4 = inlined_call_operand.hbm [shape: f32[1,128], index: 4, kind: input, shape index: {}]
  %s5 = inlined_call_operand.hbm [shape: f32[16,128], index: 5, kind: output, shape index: {}]
  %s6 = sld [smem:[#allocation0]]
  $region58: #{tpu_custom_call.1} parent=0
    _
  %s8 = ssub.s32 1, %s6
  %s9 = scalar_select 0, %s8, %s6
  $region1: #{tpu_custom_call.1} parent=0
    #allocation3 [shape = 'u8[8192]{0}', space=vmem, size = 0x2000, scoped, tag = 'input window, operand 0, single buffered']
    #allocation4 [shape = 's32[1]{0}', space=sflag, size = 0x4, scoped, tag = 'scoped memory for tpu_custom_call.1']
    #allocation5 [shape = 's32[1]{0}', space=sflag, size = 0x4, scoped, tag = 'scoped memory for tpu_custom_call.1']
    #allocation6 [shape = 'u8[65536]{0}', space=vmem, size = 0x10000, scoped, tag = 'input window, operand 1, single buffered']
    #allocation7 [shape = 's32[1]{0}', space=sflag, size = 0x4, scoped, tag = 'scoped memory for tpu_custom_call.1']
    #allocation8 [shape = 'u8[512]{0}', space=vmem, size = 0x400, scoped, tag = 'input window, operand 2, single buffered']
    #allocation9 [shape = 'u8[65536]{0}', space=vmem, size = 0x10000, scoped, tag = 'input window, operand 3, single buffered']
    #allocation10 [shape = 's32[1]{0}', space=sflag, size = 0x4, scoped, tag = 'scoped memory for tpu_custom_call.1']
    #allocation11 [shape = 'u8[512]{0}', space=vmem, size = 0x400, scoped, tag = 'input window, operand 4, single buffered']
    #allocation12 [shape = 'u8[8192]{0}', space=vmem, size = 0x2000, scoped, tag = 'output window, operand 0, single buffered']
    %10 = vsyncpa [#allocation4], 0
    %11 = vsyncpa [#allocation7], 0
    %12 = vsyncpa [#allocation10], 0
    %13 = vsyncpa [#allocation5], 0
    // Predicated region
    $region2: #{tpu_custom_call.1} parent=1 // pred_check
      _
    $region3: #{tpu_custom_call.1} parent=1 // pred_check_branch
      %15 = sbr.rel (0) target = $region5
    $region4: #{tpu_custom_call.1} parent=1 // pred_region
      %s17 = ssub.s32 256, 256
      %18 = vsyncadd [#allocation4], %s17
      %s19 = sshll.u32 [#allocation3], 4
      %s20 = int_to_ptr.vmem [resolvable:$true] %s19
      %25 = dma.hbm_to_vmem [thread:$0]  %s0, 256, %s20, [#allocation4], 128, 128, 8
    $region5: #{tpu_custom_call.1} parent=1 // pred_fallthru
      _
    // Predicated region
    $region6: #{tpu_custom_call.1} parent=1 // pred_check
      _
    $region7: #{tpu_custom_call.1} parent=1 // pred_check_branch
      %27 = sbr.rel (0) target = $region9
    $region8: #{tpu_custom_call.1} parent=1 // pred_region
      %s29 = ssub.s32 2048, 2048
      %30 = vsyncadd [#allocation7], %s29
      %s31 = sshll.u32 [#allocation6], 4
      %s32 = int_to_ptr.vmem [resolvable:$true] %s31
      %37 = dma.hbm_to_vmem [thread:$0]  %s1, 2048, %s32, [#allocation7], 128, 128, 8
    $region9: #{tpu_custom_call.1} parent=1 // pred_fallthru
      _
    // Predicated region
    $region10: #{tpu_custom_call.1} parent=1 // pred_check
      _
    $region11: #{tpu_custom_call.1} parent=1 // pred_check_branch
      %39 = sbr.rel (0) target = $region13
    $region12: #{tpu_custom_call.1} parent=1 // pred_region
      %s41 = ssub.s32 16, 16
      %42 = vsyncadd [#allocation7], %s41
      %s44 = sshll.u32 [#allocation8], 4
      %s45 = int_to_ptr.vmem [resolvable:$true] %s44
      %47 = dma.hbm_to_vmem [thread:$0]  %s2, 16, %s45, [#allocation7]
    $region13: #{tpu_custom_call.1} parent=1 // pred_fallthru
      _
    // Predicated region
    $region14: #{tpu_custom_call.1} parent=1 // pred_check
      _
    $region15: #{tpu_custom_call.1} parent=1 // pred_check_branch
      %49 = sbr.rel (0) target = $region17
    $region16: #{tpu_custom_call.1} parent=1 // pred_region
      %s51 = ssub.s32 2048, 2048
      %52 = vsyncadd [#allocation10], %s51
      %s53 = sshll.u32 [#allocation9], 4
      %s54 = int_to_ptr.vmem [resolvable:$true] %s53
      %59 = dma.hbm_to_vmem [thread:$0]  %s3, 2048, %s54, [#allocation10], 128, 128, 8
    $region17: #{tpu_custom_call.1} parent=1 // pred_fallthru
      _
    // Predicated region
    $region18: #{tpu_custom_call.1} parent=1 // pred_check
      _
    $region19: #{tpu_custom_call.1} parent=1 // pred_check_branch
      %61 = sbr.rel (0) target = $region21
    $region20: #{tpu_custom_call.1} parent=1 // pred_region
      %s63 = ssub.s32 16, 16
      %64 = vsyncadd [#allocation10], %s63
      %s66 = sshll.u32 [#allocation11], 4
      %s67 = int_to_ptr.vmem [resolvable:$true] %s66
      %69 = dma.hbm_to_vmem [thread:$0]  %s4, 16, %s67, [#allocation10]
    $region21: #{tpu_custom_call.1} parent=1 // pred_fallthru
      _
    // Predicated region
    $region22: #{tpu_custom_call.1} parent=1 // pred_check
      _
    $region23: #{tpu_custom_call.1} parent=1 // pred_check_branch
      %71 = sbr.rel (0) target = $region25
    $region24: #{tpu_custom_call.1} parent=1 // pred_region
      %72 = dma.done [#allocation4], 256
    $region25: #{tpu_custom_call.1} parent=1 // pred_fallthru
      _
    // Predicated region
    $region26: #{tpu_custom_call.1} parent=1 // pred_check
      _
    $region27: #{tpu_custom_call.1} parent=1 // pred_check_branch
      %74 = sbr.rel (0) target = $region29
    $region28: #{tpu_custom_call.1} parent=1 // pred_region
      %75 = dma.done [#allocation7], 2048
    $region29: #{tpu_custom_call.1} parent=1 // pred_fallthru
      _
    // Predicated region
    $region30: #{tpu_custom_call.1} parent=1 // pred_check
      _
    $region31: #{tpu_custom_call.1} parent=1 // pred_check_branch
      %77 = sbr.rel (0) target = $region33
    $region32: #{tpu_custom_call.1} parent=1 // pred_region
      %78 = dma.done [#allocation7], 16
    $region33: #{tpu_custom_call.1} parent=1 // pred_fallthru
      _
    // Predicated region
    $region34: #{tpu_custom_call.1} parent=1 // pred_check
      _
    $region35: #{tpu_custom_call.1} parent=1 // pred_check_branch
      %80 = sbr.rel (0) target = $region37
    $region36: #{tpu_custom_call.1} parent=1 // pred_region
      %81 = dma.done [#allocation10], 2048
    $region37: #{tpu_custom_call.1} parent=1 // pred_fallthru
      _
    // Predicated region
    $region38: #{tpu_custom_call.1} parent=1 // pred_check
      _
    $region39: #{tpu_custom_call.1} parent=1 // pred_check_branch
      %83 = sbr.rel (0) target = $region41
    $region40: #{tpu_custom_call.1} parent=1 // pred_region
      %84 = dma.done [#allocation10], 16
    $region41: #{tpu_custom_call.1} parent=1 // pred_fallthru
      _
    %p85 = scmp.eq.s32.totalorder 0, 0
    // Predicated region
    $region42: #{tpu_custom_call.1} parent=1 // pred_check
      %p86 = pneg %p85
    $region43: #{tpu_custom_call.1} parent=1 // pred_check_branch
      %88 = sbr.rel (%p86) target = $region45
    $region44: #{tpu_custom_call.1} parent=1 // pred_region
      %v89 = vld [vmem:[#allocation11] sm:$0x1]
      %v91 = vlaneseq
      %v92 = vshrl.u32 %v91, 7
      %v93 = vsub.s32 0, %v92
      %v94 = vrot.slane %v89, %v93
      %96 = vst [vmem:[#allocation2] sm:$0xff] %v94
      %97 = vst [vmem:[#allocation2 + $0x8] sm:$0xff] %v94
    $region45: #{tpu_custom_call.1} parent=1 // pred_fallthru
      _
    %v98 = vld [vmem:[#allocation3] sm:$0xff]
    %v99 = vld [vmem:[#allocation3 + $0x8] sm:$0xff]
    %v100 = vld [vmem:[#allocation6] sm:$0xff]
    %v101 = vld [vmem:[#allocation6 + $0x8] sm:$0xff]
    %v102 = vld [vmem:[#allocation6 + $0x10] sm:$0xff]
    %v103 = vld [vmem:[#allocation6 + $0x18] sm:$0xff]
    %v104 = vld [vmem:[#allocation6 + $0x20] sm:$0xff]
    %v105 = vld [vmem:[#allocation6 + $0x28] sm:$0xff]
    %v106 = vld [vmem:[#allocation6 + $0x30] sm:$0xff]
    %v107 = vld [vmem:[#allocation6 + $0x38] sm:$0xff]
    %v108 = vld [vmem:[#allocation6 + $0x40] sm:$0xff]
    %v109 = vld [vmem:[#allocation6 + $0x48] sm:$0xff]
    %v110 = vld [vmem:[#allocation6 + $0x50] sm:$0xff]
    %v111 = vld [vmem:[#allocation6 + $0x58] sm:$0xff]
    %v112 = vld [vmem:[#allocation6 + $0x60] sm:$0xff]
    %v113 = vld [vmem:[#allocation6 + $0x68] sm:$0xff]
    %v114 = vld [vmem:[#allocation6 + $0x70] sm:$0xff]
    %v115 = vld [vmem:[#allocation6 + $0x78] sm:$0xff]
    %v116 = vld [vmem:[#allocation8] sm:$0x1]
    %v118 = vlaneseq
    %v119 = vshrl.u32 %v118, 7
    %v120 = vsub.s32 0, %v119
    %v121 = vrot.slane %v116, %v120
    %123 = vmatprep.subr.mxu0 0.0
    %124 = vmatpush1.msra.mxu0 %v100
    %125 = vmatprep.subr.mxu0 0.0
    %126 = vmatpush1.msra.mxu0 %v101
    %127 = vmatprep.subr.mxu0 0.0
    %128 = vmatpush1.msra.mxu0 %v102
    %129 = vmatprep.subr.mxu0 0.0
    %130 = vmatpush1.msra.mxu0 %v103
    %131 = vmatprep.subr.mxu0 0.0
    %132 = vmatpush1.msra.mxu0 %v104
    %133 = vmatprep.subr.mxu0 0.0
    %134 = vmatpush1.msra.mxu0 %v105
    %135 = vmatprep.subr.mxu0 0.0
    %136 = vmatpush1.msra.mxu0 %v106
    %137 = vmatprep.subr.mxu0 0.0
    %138 = vmatpush1.msra.mxu0 %v107
    %139 = vmatprep.subr.mxu0 0.0
    %140 = vmatpush1.msra.mxu0 %v108
    %141 = vmatprep.subr.mxu0 0.0
    %142 = vmatpush1.msra.mxu0 %v109
    %143 = vmatprep.subr.mxu0 0.0
    %144 = vmatpush1.msra.mxu0 %v110
    %145 = vmatprep.subr.mxu0 0.0
    %146 = vmatpush1.msra.mxu0 %v111
    %147 = vmatprep.subr.mxu0 0.0
    %148 = vmatpush1.msra.mxu0 %v112
    %149 = vmatprep.subr.mxu0 0.0
    %150 = vmatpush1.msra.mxu0 %v113
    %151 = vmatprep.subr.mxu0 0.0
    %152 = vmatpush1.msra.mxu0 %v114
    %153 = vmatprep.subr.mxu0 0.0
    %154 = vmatpush1.msra.mxu0 %v115
    %155 = vmatprep.subr.mxu0 0.0
    %156 = vmatpush1.msra.mxu0 0.0
    %157 = vmatprep.subr.mxu0 0.0
    %158 = vmatpush1.msra.mxu0 0.0
    %159 = vmatprep.subr.mxu0 0.0
    %160 = vmatpush1.msra.mxu0 0.0
    %161 = vmatprep.subr.mxu0 0.0
    %162 = vmatpush1.msra.mxu0 0.0
    %163 = vmatprep.subr.mxu0 0.0
    %164 = vmatpush1.msra.mxu0 0.0
    %165 = vmatprep.subr.mxu0 0.0
    %166 = vmatpush1.msra.mxu0 0.0
    %167 = vmatprep.subr.mxu0 0.0
    %168 = vmatpush1.msra.mxu0 0.0
    %169 = vmatprep.subr.mxu0 0.0
    %170 = vmatpush1.msra.mxu0 0.0
    %171 = vmatprep.subr.mxu0 0.0
    %172 = vmatpush1.msra.mxu0 0.0
    %173 = vmatprep.subr.mxu0 0.0
    %174 = vmatpush1.msra.mxu0 0.0
    %175 = vmatprep.subr.mxu0 0.0
    %176 = vmatpush1.msra.mxu0 0.0
    %177 = vmatprep.subr.mxu0 0.0
    %178 = vmatpush1.msra.mxu0 0.0
    %179 = vmatprep.subr.mxu0 0.0
    %180 = vmatpush1.msra.mxu0 0.0
    %181 = vmatprep.subr.mxu0 0.0
    %182 = vmatpush1.msra.mxu0 0.0
    %183 = vmatprep.subr.mxu0 0.0
    %184 = vmatpush1.msra.mxu0 0.0
    %185 = vmatprep.subr.mxu0 0.0
    %186 = vmatpush1.msra.mxu0 0.0
    %187 = vmatprep.mubr.f32.mxu0 0.0
    %188 = vmatmul.mubr.f32.gmra.mrb[0].mxu0 %v98
    %v189 = vpop.f32.mrb[0].mxu0
    %v190 = vadd.f32 %v121, %v189
    %v191 = vpop.f32.mrb[0].mxu0
    %192 = vmatprep.mubr.f32.mxu0 0.0
    %193 = vmatmul.mubr.f32.gmra.mrb[0].mxu0 %v99
    %v194 = vpop.f32.mrb[0].mxu0
    %v195 = vadd.f32 %v121, %v194
    %v196 = vpop.f32.mrb[0].mxu0
    %197 = vdwg.mxu0
    %v198 = vmax.f32 %v190, 0.0
    %v199 = vmax.f32 %v195, 0.0
    %v200 = vld [vmem:[#allocation2] sm:$0xff]
    %v201 = vld [vmem:[#allocation2 + $0x8] sm:$0xff]
    %v202 = vld [vmem:[#allocation9] sm:$0xff]
    %v203 = vld [vmem:[#allocation9 + $0x8] sm:$0xff]
    %v204 = vld [vmem:[#allocation9 + $0x10] sm:$0xff]
    %v205 = vld [vmem:[#allocation9 + $0x18] sm:$0xff]
    %v206 = vld [vmem:[#allocation9 + $0x20] sm:$0xff]
    %v207 = vld [vmem:[#allocation9 + $0x28] sm:$0xff]
    %v208 = vld [vmem:[#allocation9 + $0x30] sm:$0xff]
    %v209 = vld [vmem:[#allocation9 + $0x38] sm:$0xff]
    %v210 = vld [vmem:[#allocation9 + $0x40] sm:$0xff]
    %v211 = vld [vmem:[#allocation9 + $0x48] sm:$0xff]
    %v212 = vld [vmem:[#allocation9 + $0x50] sm:$0xff]
    %v213 = vld [vmem:[#allocation9 + $0x58] sm:$0xff]
    %v214 = vld [vmem:[#allocation9 + $0x60] sm:$0xff]
    %v215 = vld [vmem:[#allocation9 + $0x68] sm:$0xff]
    %v216 = vld [vmem:[#allocation9 + $0x70] sm:$0xff]
    %v217 = vld [vmem:[#allocation9 + $0x78] sm:$0xff]
    %218 = vmatprep.subr.mxu0 0.0
    %219 = vmatpush1.msra.mxu0 %v202
    %220 = vmatprep.subr.mxu0 0.0
    %221 = vmatpush1.msra.mxu0 %v203
    %222 = vmatprep.subr.mxu0 0.0
    %223 = vmatpush1.msra.mxu0 %v204
    %224 = vmatprep.subr.mxu0 0.0
    %225 = vmatpush1.msra.mxu0 %v205
    %226 = vmatprep.subr.mxu0 0.0
    %227 = vmatpush1.msra.mxu0 %v206
    %228 = vmatprep.subr.mxu0 0.0
    %229 = vmatpush1.msra.mxu0 %v207
    %230 = vmatprep.subr.mxu0 0.0
    %231 = vmatpush1.msra.mxu0 %v208
    %232 = vmatprep.subr.mxu0 0.0
    %233 = vmatpush1.msra.mxu0 %v209
    %234 = vmatprep.subr.mxu0 0.0
    %235 = vmatpush1.msra.mxu0 %v210
    %236 = vmatprep.subr.mxu0 0.0
    %237 = vmatpush1.msra.mxu0 %v211
    %238 = vmatprep.subr.mxu0 0.0
    %239 = vmatpush1.msra.mxu0 %v212
    %240 = vmatprep.subr.mxu0 0.0
    %241 = vmatpush1.msra.mxu0 %v213
    %242 = vmatprep.subr.mxu0 0.0
    %243 = vmatpush1.msra.mxu0 %v214
    %244 = vmatprep.subr.mxu0 0.0
    %245 = vmatpush1.msra.mxu0 %v215
    %246 = vmatprep.subr.mxu0 0.0
    %247 = vmatpush1.msra.mxu0 %v216
    %248 = vmatprep.subr.mxu0 0.0
    %249 = vmatpush1.msra.mxu0 %v217
    %250 = vmatprep.subr.mxu0 0.0
    %251 = vmatpush1.msra.mxu0 0.0
    %252 = vmatprep.subr.mxu0 0.0
    %253 = vmatpush1.msra.mxu0 0.0
    %254 = vmatprep.subr.mxu0 0.0
    %255 = vmatpush1.msra.mxu0 0.0
    %256 = vmatprep.subr.mxu0 0.0
    %257 = vmatpush1.msra.mxu0 0.0
    %258 = vmatprep.subr.mxu0 0.0
    %259 = vmatpush1.msra.mxu0 0.0
    %260 = vmatprep.subr.mxu0 0.0
    %261 = vmatpush1.msra.mxu0 0.0
    %262 = vmatprep.subr.mxu0 0.0
    %263 = vmatpush1.msra.mxu0 0.0
    %264 = vmatprep.subr.mxu0 0.0
    %265 = vmatpush1.msra.mxu0 0.0
    %266 = vmatprep.subr.mxu0 0.0
    %267 = vmatpush1.msra.mxu0 0.0
    %268 = vmatprep.subr.mxu0 0.0
    %269 = vmatpush1.msra.mxu0 0.0
    %270 = vmatprep.subr.mxu0 0.0
    %271 = vmatpush1.msra.mxu0 0.0
    %272 = vmatprep.subr.mxu0 0.0
    %273 = vmatpush1.msra.mxu0 0.0
    %274 = vmatprep.subr.mxu0 0.0
    %275 = vmatpush1.msra.mxu0 0.0
    %276 = vmatprep.subr.mxu0 0.0
    %277 = vmatpush1.msra.mxu0 0.0
    %278 = vmatprep.subr.mxu0 0.0
    %279 = vmatpush1.msra.mxu0 0.0
    %280 = vmatprep.subr.mxu0 0.0
    %281 = vmatpush1.msra.mxu0 0.0
    %282 = vmatprep.mubr.f32.mxu0 0.0
    %283 = vmatmul.mubr.f32.gmra.mrb[0].mxu0 %v198
    %v284 = vpop.f32.mrb[0].mxu0
    %v285 = vadd.f32 0.0, %v284
    %v286 = vpop.f32.mrb[0].mxu0
    %287 = vmatprep.mubr.f32.mxu0 0.0
    %288 = vmatmul.mubr.f32.gmra.mrb[0].mxu0 %v199
    %v289 = vpop.f32.mrb[0].mxu0
    %v290 = vadd.f32 0.0, %v289
    %v291 = vpop.f32.mrb[0].mxu0
    %292 = vdwg.mxu0
    %v293 = vadd.f32 %v200, %v285
    %v294 = vadd.f32 %v201, %v290
    %295 = vst [vmem:[#allocation2] sm:$0xff] %v293
    %296 = vst [vmem:[#allocation2 + $0x8] sm:$0xff] %v294
    // Predicated region
    $region46: #{tpu_custom_call.1} parent=1 // pred_check
      %p297 = pneg %p85
    $region47: #{tpu_custom_call.1} parent=1 // pred_check_branch
      %299 = sbr.rel (%p297) target = $region49
    $region48: #{tpu_custom_call.1} parent=1 // pred_region
      %v300 = vld [vmem:[#allocation2] sm:$0xff]
      %v301 = vld [vmem:[#allocation2 + $0x8] sm:$0xff]
      %302 = vst [vmem:[#allocation12] sm:$0xff] %v300
      %303 = vst [vmem:[#allocation12 + $0x8] sm:$0xff] %v301
    $region49: #{tpu_custom_call.1} parent=1 // pred_fallthru
      _
    // Predicated region
    $region50: #{tpu_custom_call.1} parent=1 // pred_check
      _
    $region51: #{tpu_custom_call.1} parent=1 // pred_check_branch
      %305 = sbr.rel (0) target = $region53
    $region52: #{tpu_custom_call.1} parent=1 // pred_region
      %s307 = ssub.s32 256, 256
      %308 = vsyncadd [#allocation5], %s307
      %s309 = sshll.u32 [#allocation12], 4
      %s310 = int_to_ptr.vmem [resolvable:$true] %s309
      %315 = dma.vmem_to_hbm [thread:$0]  %s310, 256, %s5, [#allocation5], 128, 128, 8
    $region53: #{tpu_custom_call.1} parent=1 // pred_fallthru
      _
    // Predicated region
    $region54: #{tpu_custom_call.1} parent=1 // pred_check
      _
    $region55: #{tpu_custom_call.1} parent=1 // pred_check_branch
      %317 = sbr.rel (0) target = $region57
    $region56: #{tpu_custom_call.1} parent=1 // pred_region
      %318 = dma.done [#allocation5], 256
    $region57: #{tpu_custom_call.1} parent=1 // pred_fallthru
      _
    %319 = vsyncpa [#allocation4], 1
    %320 = vsyncpa [#allocation7], 1
    %321 = vsyncpa [#allocation10], 1
    %322 = vsyncpa [#allocation5], 1

</llo_original>
